<compile_context>
chip_gen: v6e
topology: v6e:2x2x1
jax: 0.10.0
libtpu: 0.0.40
codegen_flags: <defaults>
</compile_context>

<pallas_src>
import math

import jax
import jax.numpy as jnp
from jax import lax
from jax.experimental import pallas as pl
from jax.experimental.pallas import tpu as pltpu

LEAKY_SLOPE = 0.2


def _round_up(n, m):
    return ((n + m - 1) // m) * m


def pack_params(weights, biases):
    """Pack transposed weights [in,out] and lane-dense bias rows into one buffer.

    Layer i: W_i^T occupies rows [wr_i, wr_i+in_i) x cols [0, out_i); its bias
    occupies the single (sublane-aligned) row br_i, cols [0, out_i).  The last
    dim is padded to a multiple of 128 for clean (8,128) tiling.
    Returns (buffer, metas) with metas[i] = (wr_i, br_i, in_i, out_i).
    """
    max_out = max(int(w.shape[0]) for w in weights)
    cols = _round_up(max_out, 128)
    metas = []
    r = 0
    for w in weights:
        out_i, in_i = int(w.shape[0]), int(w.shape[1])
        w_rows = _round_up(in_i, 8)
        metas.append((r, r + w_rows, in_i, out_i))
        r += w_rows + 8  # 8 sublane-aligned rows reserved for the bias row
    rows = _round_up(r, 8)

    buf = jnp.zeros((rows, cols), jnp.float32)
    for (w, b), (wr, br, in_i, out_i) in zip(zip(weights, biases), metas):
        buf = buf.at[wr:wr + in_i, 0:out_i].set(jnp.asarray(w, jnp.float32).T)
        buf = buf.at[br, 0:out_i].set(jnp.asarray(b, jnp.float32))
    return buf, tuple(metas)


def _choose_tiles(B, C, L, budget_bytes=8 << 20):
    """Pick (batch_tile, l_tile) so one x tile stays <= ~8 MiB (v7x-safe)."""
    tb = B if B <= 256 else 256
    if L <= 512:
        l_tile = L                                  # full dim -> always legal
    else:
        per_l = max(1, tb * C * 4)
        l_tile = max(128, min(1024, (budget_bytes // per_l) // 128 * 128))
    # Shrink the batch tile (to a multiple of 8) if still over budget.
    while tb > 8 and tb * C * l_tile * 4 > budget_bytes:
        tb = max(8, _round_up(tb // 2, 8))
    return tb, l_tile


def _make_kernel(C, L, l_tile, metas, needs_mask):
    inv_L = 1.0 / float(L)
    n_layers = len(metas)

    def kernel(x_ref, p_ref, o_ref, m_acc, s_acc):
        pid_l = pl.program_id(1)

        @pl.when(pid_l == 0)
        def _():
            m_acc[...] = jnp.full_like(m_acc, -jnp.inf)
            s_acc[...] = jnp.zeros_like(s_acc)

        x = x_ref[...]                                   # [TB, C, l_tile]
        if needs_mask:
            lane = lax.broadcasted_iota(jnp.int32, x.shape, 2)
            valid = (lane + pid_l * l_tile) < L
            xm = jnp.where(valid, x, -jnp.inf)
            xs = jnp.where(valid, x, 0.0)
        else:
            xm = xs = x

        # adaptive_{max,avg}_pool1d(x, 1): reduce over the lane (L) axis.
        m_acc[...] = jnp.maximum(m_acc[...], jnp.max(xm, axis=-1))
        s_acc[...] = s_acc[...] + jnp.sum(xs, axis=-1)

        @pl.when(pid_l == pl.num_programs(1) - 1)
        def _():
            fmax = m_acc[...]                            # [TB, C]
            favg = s_acc[...] * inv_L                    # [TB, C]

            # Layer 0: split W1 into max-/avg-feature halves (no sublane concat).
            wr0, br0, _in0, out0 = metas[0]
            w_m = p_ref[wr0:wr0 + C, 0:out0]
            w_a = p_ref[wr0 + C:wr0 + 2 * C, 0:out0]
            b0 = p_ref[br0:br0 + 1, 0:out0]
            h = (jnp.dot(fmax, w_m, preferred_element_type=jnp.float32)
                 + jnp.dot(favg, w_a, preferred_element_type=jnp.float32)
                 + b0)
            h = jnp.maximum(h, LEAKY_SLOPE * h)          # LeakyReLU(0.2)

            for i in range(1, n_layers):
                wr, br, in_i, out_i = metas[i]
                w = p_ref[wr:wr + in_i, 0:out_i]
                b = p_ref[br:br + 1, 0:out_i]
                h = jnp.dot(h, w, preferred_element_type=jnp.float32) + b
                if i < n_layers - 1:
                    h = jnp.maximum(h, LEAKY_SLOPE * h)

            # Softmax over the size-1 logit dim: finite -> 1.0, NaN propagates.
            o_ref[...] = (h - h) + 1.0

    return kernel


def critic_arm_forward(x, packed, metas):
    """x: [B, C, L] float32 (native torch layout).  Returns [B, 1]."""
    B, C, L = (int(d) for d in x.shape)
    assert len(metas) >= 2, "module always has >=1 hidden layer + final Linear"
    assert metas[0][2] == 2 * C, "first Linear expects 2*C input features"

    TB, l_tile = _choose_tiles(B, C, L)
    grid_b = pl.cdiv(B, TB)
    grid_l = pl.cdiv(L, l_tile)
    needs_mask = (L % l_tile) != 0

    kernel = _make_kernel(C, L, l_tile, metas, needs_mask)

    tile_bytes = TB * C * l_tile * 4
    packed_bytes = int(packed.size) * 4
    scratch_bytes = 2 * TB * C * 4
    vmem_limit = int(min(max(2 * tile_bytes + 2 * packed_bytes + scratch_bytes
                             + (4 << 20), 16 << 20), 48 << 20))

    flops = 2 * B * C * L + 2 * B * sum(in_i * out_i for _, _, in_i, out_i in metas)
    cost = pl.CostEstimate(flops=flops, transcendentals=0,
                           bytes_accessed=4 * (B * C * L + int(packed.size) + B))

    return pl.pallas_call(
        kernel,
        out_shape=jax.ShapeDtypeStruct((B, 1), jnp.float32),
        grid_spec=pltpu.PrefetchScalarGridSpec(
            num_scalar_prefetch=0,
            grid=(grid_b, grid_l),
            in_specs=[
                pl.BlockSpec((TB, C, l_tile), lambda i, l: (i, 0, l)),
                # Packed params stay resident: same (0, 0) block every step.
                pl.BlockSpec(packed.shape, lambda i, l: (0, 0)),
            ],
            out_specs=pl.BlockSpec((TB, 1), lambda i, l: (i, 0)),
            scratch_shapes=[pltpu.VMEM((TB, C), jnp.float32),   # running max
                            pltpu.VMEM((TB, C), jnp.float32)],  # running sum
        ),
        compiler_params=pltpu.CompilerParams(
            dimension_semantics=("parallel", "arbitrary"),
            vmem_limit_bytes=vmem_limit,
        ),
        cost_estimate=cost,
    )(x.astype(jnp.float32), packed)


def init_params(key, shared_output_dim, arm_list):
    """nn.Linear-style init; weights kept in native torch [out, in] layout."""
    dims = [shared_output_dim] + list(arm_list) + [1]
    weights, biases = [], []
    for i in range(len(dims) - 1):
        in_d, out_d = dims[i], dims[i + 1]
        key, kw, kb = jax.random.split(key, 3)
        bound = 1.0 / math.sqrt(in_d)
        weights.append(
            jax.random.uniform(kw, (out_d, in_d), jnp.float32, -bound, bound))
        biases.append(
            jax.random.uniform(kb, (out_d,), jnp.float32, -bound, bound))
    return weights, biases


if __name__ == "__main__":
    # Small shapes consistent with the module:
    #   x: [B, C, L]; shared_output_dim = 2*C (cat of max-pool & avg-pool feats)
    batch, C, L = 2, 8, 16
    shared_output_dim = 2 * C
    arm_list = [32, 16]

    key = jax.random.PRNGKey(0)
    key, kx = jax.random.split(key)
    x = jax.random.normal(kx, (batch, C, L), jnp.float32)

    weights, biases = init_params(key, shared_output_dim, arm_list)
    packed, metas = pack_params(weights, biases)

    out = critic_arm_forward(x, packed, metas)
    out = jax.block_until_ready(out)

    # Pure-JAX reference of the torch forward (softmax over a single logit).
    fmax = jnp.max(x, axis=-1)
    favg = jnp.mean(x, axis=-1)
    h = jnp.concatenate([fmax, favg], axis=1)
    for i, (w, b) in enumerate(zip(weights, biases)):
        h = h @ w.T + b
        if i < len(weights) - 1:
            h = jnp.where(h >= 0, h, LEAKY_SLOPE * h)
    ref = jax.nn.softmax(h, axis=-1)

    assert out.shape == (batch, 1)
    assert bool(jnp.all(jnp.isfinite(out)))
    assert bool(jnp.allclose(out, ref, atol=1e-6))

    print("KERNEL_OK")
</pallas_src>

<mosaic_0001>
module attributes {stable_mosaic.version = 11 : i64} {
  func.func @kernel(%arg0: i32, %arg1: i32, %arg2: memref<2x8x16xf32, #tpu.memory_space<vmem>>, %arg3: memref<88x128xf32, #tpu.memory_space<vmem>>, %arg4: memref<2x1xf32, #tpu.memory_space<vmem>>, %arg5: memref<2x8xf32, #tpu.memory_space<vmem>>, %arg6: memref<2x8xf32, #tpu.memory_space<vmem>>) attributes {dimension_semantics = [#tpu.dimension_semantics<parallel>, #tpu.dimension_semantics<arbitrary>], iteration_bounds = array<i64: 1, 1>, scalar_prefetch = 0 : i64, scratch_operands = 2 : i64, tpu.core_type = #tpu.core_type<tc>, window_params = [{transform_indices = @transform_0, window_bounds = array<i64: 2, 8, 16>}, {pipeline_mode = #tpu.pipeline_mode<synchronous>, transform_indices = @transform_1, window_bounds = array<i64: 88, 128>}, {transform_indices = @transform_2, window_bounds = array<i64: 2, 1>}]} {
    %c0_i32 = arith.constant 0 : i32
    %0 = arith.cmpi eq, %arg1, %c0_i32 : i32
    %1 = arith.extui %0 : i1 to i32
    %c0_i32_0 = arith.constant 0 : i32
    %2 = arith.cmpi ne, %1, %c0_i32_0 : i32
    scf.if %2 {
      %cst_14 = arith.constant 0xFF800000 : f32
      %15 = vector.broadcast %cst_14 : f32 to vector<2x8xf32>
      %c0_15 = arith.constant 0 : index
      %c0_16 = arith.constant 0 : index
      %16 = vector.load %arg5[%c0_15, %c0_16] : memref<2x8xf32, #tpu.memory_space<vmem>>, vector<2x8xf32>
      tpu.vector_store %arg5[%c0_15, %c0_16], %15 {strides = array<i32>} : memref<2x8xf32, #tpu.memory_space<vmem>>, vector<2x8xf32>,
      %cst_17 = arith.constant 0.000000e+00 : f32
      %17 = vector.broadcast %cst_17 : f32 to vector<2x8xf32>
      %c0_18 = arith.constant 0 : index
      %c0_19 = arith.constant 0 : index
      %18 = vector.load %arg6[%c0_18, %c0_19] : memref<2x8xf32, #tpu.memory_space<vmem>>, vector<2x8xf32>
      tpu.vector_store %arg6[%c0_18, %c0_19], %17 {strides = array<i32>} : memref<2x8xf32, #tpu.memory_space<vmem>>, vector<2x8xf32>,
    } else {
    }
    %c0 = arith.constant 0 : index
    %c0_1 = arith.constant 0 : index
    %c0_2 = arith.constant 0 : index
    %3 = vector.load %arg2[%c0, %c0_1, %c0_2] : memref<2x8x16xf32, #tpu.memory_space<vmem>>, vector<2x8x16xf32>
    %c0_3 = arith.constant 0 : index
    %c0_4 = arith.constant 0 : index
    %4 = vector.load %arg5[%c0_3, %c0_4] : memref<2x8xf32, #tpu.memory_space<vmem>>, vector<2x8xf32>
    %cst = arith.constant dense<0xFF800000> : vector<2x8xf32>
    %5 = vector.multi_reduction <maximumf>, %3, %cst [2] : vector<2x8x16xf32> to vector<2x8xf32>
    %6 = arith.maximumf %4, %5 : vector<2x8xf32>
    %c0_5 = arith.constant 0 : index
    %c0_6 = arith.constant 0 : index
    %7 = vector.load %arg5[%c0_5, %c0_6] : memref<2x8xf32, #tpu.memory_space<vmem>>, vector<2x8xf32>
    tpu.vector_store %arg5[%c0_5, %c0_6], %6 {strides = array<i32>} : memref<2x8xf32, #tpu.memory_space<vmem>>, vector<2x8xf32>,
    %c0_7 = arith.constant 0 : index
    %c0_8 = arith.constant 0 : index
    %8 = vector.load %arg6[%c0_7, %c0_8] : memref<2x8xf32, #tpu.memory_space<vmem>>, vector<2x8xf32>
    %cst_9 = arith.constant dense<0.000000e+00> : vector<2x8xf32>
    %9 = vector.multi_reduction <add>, %3, %cst_9 [2] : vector<2x8x16xf32> to vector<2x8xf32>
    %10 = arith.addf %8, %9 : vector<2x8xf32>
    %c0_10 = arith.constant 0 : index
    %c0_11 = arith.constant 0 : index
    %11 = vector.load %arg6[%c0_10, %c0_11] : memref<2x8xf32, #tpu.memory_space<vmem>>, vector<2x8xf32>
    tpu.vector_store %arg6[%c0_10, %c0_11], %10 {strides = array<i32>} : memref<2x8xf32, #tpu.memory_space<vmem>>, vector<2x8xf32>,
    %c0_i32_12 = arith.constant 0 : i32
    %12 = arith.cmpi eq, %arg1, %c0_i32_12 : i32
    %13 = arith.extui %12 : i1 to i32
    %c0_i32_13 = arith.constant 0 : i32
    %14 = arith.cmpi ne, %13, %c0_i32_13 : i32
    scf.if %14 {
      %c0_14 = arith.constant 0 : index
      %c0_15 = arith.constant 0 : index
      %15 = vector.load %arg5[%c0_14, %c0_15] : memref<2x8xf32, #tpu.memory_space<vmem>>, vector<2x8xf32>
      %c0_16 = arith.constant 0 : index
      %c0_17 = arith.constant 0 : index
      %16 = vector.load %arg6[%c0_16, %c0_17] : memref<2x8xf32, #tpu.memory_space<vmem>>, vector<2x8xf32>
      %cst_18 = arith.constant 6.250000e-02 : f32
      %17 = vector.broadcast %cst_18 : f32 to vector<2x8xf32>
      %18 = arith.mulf %16, %17 : vector<2x8xf32>
      %c0_19 = arith.constant 0 : index
      %c0_20 = arith.constant 0 : index
      %19 = vector.load %arg3[%c0_19, %c0_20] : memref<88x128xf32, #tpu.memory_space<vmem>>, vector<8x32xf32>
      %c8 = arith.constant 8 : index
      %c0_21 = arith.constant 0 : index
      %20 = vector.load %arg3[%c8, %c0_21] : memref<88x128xf32, #tpu.memory_space<vmem>>, vector<8x32xf32>
      %c16 = arith.constant 16 : index
      %c0_22 = arith.constant 0 : index
      %21 = vector.load %arg3[%c16, %c0_22] : memref<88x128xf32, #tpu.memory_space<vmem>>, vector<1x32xf32>
      %cst_23 = arith.constant dense<0.000000e+00> : vector<2x32xf32>
      %22 = tpu.matmul %15, %19, %cst_23 {dimension_numbers = #tpu.dot_dimension_numbers<[1], [0], [0], [1], [0, 0, 1, 1], [], []>} : vector<2x8xf32>, vector<8x32xf32>, vector<2x32xf32> -> vector<2x32xf32>
      %cst_24 = arith.constant dense<0.000000e+00> : vector<2x32xf32>
      %23 = tpu.matmul %18, %20, %cst_24 {dimension_numbers = #tpu.dot_dimension_numbers<[1], [0], [0], [1], [0, 0, 1, 1], [], []>} : vector<2x8xf32>, vector<8x32xf32>, vector<2x32xf32> -> vector<2x32xf32>
      %24 = arith.addf %22, %23 : vector<2x32xf32>
      %25 = vector.broadcast %21 : vector<1x32xf32> to vector<2x32xf32>
      %26 = arith.addf %24, %25 : vector<2x32xf32>
      %cst_25 = arith.constant 2.000000e-01 : f32
      %27 = vector.broadcast %cst_25 : f32 to vector<2x32xf32>
      %28 = arith.mulf %27, %26 : vector<2x32xf32>
      %29 = arith.maximumf %26, %28 : vector<2x32xf32>
      %c24 = arith.constant 24 : index
      %c0_26 = arith.constant 0 : index
      %30 = vector.load %arg3[%c24, %c0_26] : memref<88x128xf32, #tpu.memory_space<vmem>>, vector<32x16xf32>
      %c56 = arith.constant 56 : index
      %c0_27 = arith.constant 0 : index
      %31 = vector.load %arg3[%c56, %c0_27] : memref<88x128xf32, #tpu.memory_space<vmem>>, vector<1x16xf32>
      %cst_28 = arith.constant dense<0.000000e+00> : vector<2x16xf32>
      %32 = tpu.matmul %29, %30, %cst_28 {dimension_numbers = #tpu.dot_dimension_numbers<[1], [0], [0], [1], [0, 0, 1, 1], [], []>} : vector<2x32xf32>, vector<32x16xf32>, vector<2x16xf32> -> vector<2x16xf32>
      %33 = vector.broadcast %31 : vector<1x16xf32> to vector<2x16xf32>
      %34 = arith.addf %32, %33 : vector<2x16xf32>
      %cst_29 = arith.constant 2.000000e-01 : f32
      %35 = vector.broadcast %cst_29 : f32 to vector<2x16xf32>
      %36 = arith.mulf %35, %34 : vector<2x16xf32>
      %37 = arith.maximumf %34, %36 : vector<2x16xf32>
      %c64 = arith.constant 64 : index
      %c0_30 = arith.constant 0 : index
      %38 = vector.load %arg3[%c64, %c0_30] : memref<88x128xf32, #tpu.memory_space<vmem>>, vector<16x1xf32>
      %c80 = arith.constant 80 : index
      %c0_31 = arith.constant 0 : index
      %39 = vector.load %arg3[%c80, %c0_31] : memref<88x128xf32, #tpu.memory_space<vmem>>, vector<1x1xf32>
      %cst_32 = arith.constant dense<0.000000e+00> : vector<2x1xf32>
      %40 = tpu.matmul %37, %38, %cst_32 {dimension_numbers = #tpu.dot_dimension_numbers<[1], [0], [0], [1], [0, 0, 1, 1], [], []>} : vector<2x16xf32>, vector<16x1xf32>, vector<2x1xf32> -> vector<2x1xf32>
      %41 = vector.broadcast %39 : vector<1x1xf32> to vector<2x1xf32>
      %42 = arith.addf %40, %41 : vector<2x1xf32>
      %43 = arith.subf %42, %42 : vector<2x1xf32>
      %cst_33 = arith.constant 1.000000e+00 : f32
      %44 = vector.broadcast %cst_33 : f32 to vector<2x1xf32>
      %45 = arith.addf %43, %44 : vector<2x1xf32>
      %c0_34 = arith.constant 0 : index
      %c0_35 = arith.constant 0 : index
      %46 = vector.load %arg4[%c0_34, %c0_35] : memref<2x1xf32, #tpu.memory_space<vmem>>, vector<2x1xf32>
      tpu.vector_store %arg4[%c0_34, %c0_35], %45 {strides = array<i32>} : memref<2x1xf32, #tpu.memory_space<vmem>>, vector<2x1xf32>,
    } else {
    }
    return
  }
  func.func @transform_0(%arg0: i32, %arg1: i32) -> (i32, i32, i32) {
    %c0_i32 = arith.constant 0 : i32
    %c0_i32_0 = arith.constant 0 : i32
    return %arg0, %c0_i32, %arg1 : i32, i32, i32
  }
  func.func @transform_1(%arg0: i32, %arg1: i32) -> (i32, i32) {
    %c0_i32 = arith.constant 0 : i32
    %c0_i32_0 = arith.constant 0 : i32
    %c0_i32_1 = arith.constant 0 : i32
    return %c0_i32, %c0_i32_0 : i32, i32
  }
  func.func @transform_2(%arg0: i32, %arg1: i32) -> (i32, i32) {
    %c0_i32 = arith.constant 0 : i32
    %c0_i32_0 = arith.constant 0 : i32
    return %arg0, %c0_i32 : i32, i32
  }
}

</mosaic_0001>

<llo_original>
// kernel: tpu_custom_call.1
$region0: #{tpu_custom_call.1}
  #allocation0 [shape = 'u32[]', space=smem, size = 0x4, offset = 0x4, fixed_abs, tag = 'smem constant byte address 0x4 - core index']
  #allocation1 [shape = 'u32[144,128]{1,0:T(1,128)}', space=vmem, size = 0x12000, scoped, tag = 'internal scratch']
  #allocation2 [shape = 'f32[2,8]{1,0:T(2,128)}', space=vmem, size = 0x400, scoped, tag = 'scratch operand']
  #allocation3 [shape = 'f32[2,8]{1,0:T(2,128)}', space=vmem, size = 0x400, scoped, tag = 'scratch operand']
  %s0 = inlined_call_operand.hbm [shape: f32[2,8,16], index: 0, kind: input, shape index: {}]
  %s1 = inlined_call_operand.hbm [shape: f32[88,128], index: 1, kind: input, shape index: {}]
  %s2 = inlined_call_operand.vmem [shape: f32[2,1], index: 2, kind: output, shape index: {}]
  %s3 = sld [smem:[#allocation0]]
  $region34: #{tpu_custom_call.1} parent=0
    _
  %s5 = ssub.s32 1, %s3
  %s6 = scalar_select 0, %s5, %s3
  $region1: #{tpu_custom_call.1} parent=0
    #allocation4 [shape = 'u8[8192]{0}', space=vmem, size = 0x2000, scoped, tag = 'input window, operand 0, single buffered']
    #allocation5 [shape = 's32[1]{0}', space=sflag, size = 0x4, scoped, tag = 'scoped memory for tpu_custom_call.1']
    #allocation6 [shape = 'u8[45056]{0}', space=vmem, size = 0xb000, scoped, tag = 'input window, operand 1, single buffered']
    #allocation7 [shape = 's32[1]{0}', space=sflag, size = 0x4, scoped, tag = 'scoped memory for tpu_custom_call.1']
    %7 = vsyncpa [#allocation5], 0
    %8 = vsyncpa [#allocation7], 0
    // Predicated region
    $region2: #{tpu_custom_call.1} parent=1 // pred_check
      _
    $region3: #{tpu_custom_call.1} parent=1 // pred_check_branch
      %10 = sbr.rel (0) target = $region5
    $region4: #{tpu_custom_call.1} parent=1 // pred_region
      %s12 = ssub.s32 256, 256
      %13 = vsyncadd [#allocation5], %s12
      %s14 = sshll.u32 [#allocation4], 4
      %s15 = int_to_ptr.vmem [resolvable:$true] %s14
      %20 = dma.hbm_to_vmem [thread:$0]  %s0, 256, %s15, [#allocation5], 128, 128, 8
    $region5: #{tpu_custom_call.1} parent=1 // pred_fallthru
      _
    // Predicated region
    $region6: #{tpu_custom_call.1} parent=1 // pred_check
      _
    $region7: #{tpu_custom_call.1} parent=1 // pred_check_branch
      %22 = sbr.rel (0) target = $region9
    $region8: #{tpu_custom_call.1} parent=1 // pred_region
      %s24 = ssub.s32 1408, 1408
      %25 = vsyncadd [#allocation7], %s24
      %s26 = sshll.u32 [#allocation6], 4
      %s27 = int_to_ptr.vmem [resolvable:$true] %s26
      %32 = dma.hbm_to_vmem [thread:$0]  %s1, 1408, %s27, [#allocation7], 128, 128, 8
    $region9: #{tpu_custom_call.1} parent=1 // pred_fallthru
      _
    // Predicated region
    $region10: #{tpu_custom_call.1} parent=1 // pred_check
      _
    $region11: #{tpu_custom_call.1} parent=1 // pred_check_branch
      %34 = sbr.rel (0) target = $region13
    $region12: #{tpu_custom_call.1} parent=1 // pred_region
      %35 = dma.done [#allocation5], 256
    $region13: #{tpu_custom_call.1} parent=1 // pred_fallthru
      _
    // Predicated region
    $region14: #{tpu_custom_call.1} parent=1 // pred_check
      _
    $region15: #{tpu_custom_call.1} parent=1 // pred_check_branch
      %37 = sbr.rel (0) target = $region17
    $region16: #{tpu_custom_call.1} parent=1 // pred_region
      %38 = dma.done [#allocation7], 1408
    $region17: #{tpu_custom_call.1} parent=1 // pred_fallthru
      _
    %p39 = scmp.eq.s32.totalorder 0, 0
    // Predicated region
    $region18: #{tpu_custom_call.1} parent=1 // pred_check
      %p40 = pneg %p39
    $region19: #{tpu_custom_call.1} parent=1 // pred_check_branch
      %42 = sbr.rel (%p40) target = $region21
    $region20: #{tpu_custom_call.1} parent=1 // pred_region
      %vm43 = vcmask 58368
      %44 = vst.msk [vmem:[#allocation2] sm:$0x3] %vm43, -inf
      %45 = vst.msk [vmem:[#allocation3] sm:$0x3] %vm43, 0.0
    $region21: #{tpu_custom_call.1} parent=1 // pred_fallthru
      _
    %v46 = vld [vmem:[#allocation4] sm:$0xff]
    %v47 = vld [vmem:[#allocation4 + $0x8] sm:$0xff]
    %v48 = vld [vmem:[#allocation2] sm:$0x3]
    %vm49 = vcmask 130048
    %v50 = vsel %vm49, %v46, -inf
    %51 = vmax.xlane.f32.xlu0 %v50
    %v52 = vpop.xlane.xlu0 %51
    %v53 = vsel %vm49, %v47, -inf
    %54 = vmax.xlane.f32.xlu0 %v53
    %v55 = vpop.xlane.xlu0 %54
    %v58 = vlaneseq
    %v59 = vand.u32 %v58, 127
    %v60 = vlaneseq
    %v61 = vshrl.u32 %v60, 7
    %v62 = vsub.s32 %v59, %v61
    %v63 = vrot.slane %v52, %v62
    %v64 = vlaneseq
    %v65 = vshrl.u32 %v64, 7
    %v66 = vsub.s32 %v59, %v65
    %v67 = vrot.slane %v55, %v66
    %vm68 = vcmask 1041409
    %v69 = vsel %vm68, %v67, %v63
    %v71 = vmax.f32 %v48, %v69
    %vm72 = vcmask 58368
    %73 = vst.msk [vmem:[#allocation2] sm:$0x3] %vm72, %v71
    %v74 = vld [vmem:[#allocation3] sm:$0x3]
    %v75 = vsel %vm49, %v46, 0.0
    %76 = vadd.xlane.f32.xlu0 %v75
    %v77 = vpop.xlane.xlu0 %76
    %v78 = vsel %vm49, %v47, 0.0
    %79 = vadd.xlane.f32.xlu0 %v78
    %v80 = vpop.xlane.xlu0 %79
    %v83 = vlaneseq
    %v84 = vshrl.u32 %v83, 7
    %v85 = vsub.s32 %v59, %v84
    %v86 = vrot.slane %v77, %v85
    %v87 = vlaneseq
    %v88 = vshrl.u32 %v87, 7
    %v89 = vsub.s32 %v59, %v88
    %v90 = vrot.slane %v80, %v89
    %v91 = vsel %vm68, %v90, %v86
    %v93 = vadd.f32 %v74, %v91
    %94 = vst.msk [vmem:[#allocation3] sm:$0x3] %vm72, %v93
    // Predicated region
    $region22: #{tpu_custom_call.1} parent=1 // pred_check
      %p95 = pneg %p39
    $region23: #{tpu_custom_call.1} parent=1 // pred_check_branch
      %97 = sbr.rel (%p95) target = $region25
    $region24: #{tpu_custom_call.1} parent=1 // pred_region
      %v98 = vld [vmem:[#allocation2] sm:$0x3]
      %v99 = vld [vmem:[#allocation3] sm:$0x3]
      %v100 = vmul.f32 %v99, 0.0625
      %v101 = vld [vmem:[#allocation6] sm:$0xff]
      %v102 = vld [vmem:[#allocation6 + $0x8] sm:$0xff]
      %v103 = vld [vmem:[#allocation6 + $0x10] sm:$0x1]
      %vm104 = vcmask 64512
      %v106 = vsel %vm104, %v100, 0
      %108 = vmatprep.subr.mxu0 0.0
      %109 = vmatpush1.msra.mxu0 0.0
      %110 = vmatprep.subr.mxu0 0.0
      %111 = vmatpush1.msra.mxu0 0.0
      %112 = vmatprep.subr.mxu0 0.0
      %113 = vmatpush1.msra.mxu0 0.0
      %114 = vmatprep.subr.mxu0 0.0
      %115 = vmatpush1.msra.mxu0 0.0
      %116 = vmatprep.subr.mxu0 0.0
      %117 = vmatpush1.msra.mxu0 0.0
      %118 = vmatprep.subr.mxu0 0.0
      %119 = vmatpush1.msra.mxu0 0.0
      %120 = vmatprep.subr.mxu0 0.0
      %121 = vmatpush1.msra.mxu0 0.0
      %122 = vmatprep.subr.mxu0 0.0
      %123 = vmatpush1.msra.mxu0 0.0
      %124 = vmatprep.subr.mxu0 0.0
      %125 = vmatpush1.msra.mxu0 0.0
      %126 = vmatprep.subr.mxu0 0.0
      %127 = vmatpush1.msra.mxu0 0.0
      %128 = vmatprep.subr.mxu0 0.0
      %129 = vmatpush1.msra.mxu0 0.0
      %130 = vmatprep.subr.mxu0 0.0
      %131 = vmatpush1.msra.mxu0 0.0
      %132 = vmatprep.subr.mxu0 0.0
      %133 = vmatpush1.msra.mxu0 0.0
      %134 = vmatprep.subr.mxu0 0.0
      %135 = vmatpush1.msra.mxu0 0.0
      %136 = vmatprep.subr.mxu0 0.0
      %137 = vmatpush1.msra.mxu0 0.0
      %138 = vmatprep.subr.mxu0 0.0
      %139 = vmatpush1.msra.mxu0 %v102
      %140 = vmatprep.subr.mxu0 0.0
      %141 = vmatpush2.msra.mxu0 0.0
      %142 = vmatprep.subr.mxu0 0.0
      %143 = vmatpush2.msra.mxu0 0.0
      %144 = vmatprep.subr.mxu0 0.0
      %145 = vmatpush2.msra.mxu0 0.0
      %146 = vmatprep.subr.mxu0 0.0
      %147 = vmatpush2.msra.mxu0 0.0
      %148 = vmatprep.subr.mxu0 0.0
      %149 = vmatpush2.msra.mxu0 0.0
      %150 = vmatprep.subr.mxu0 0.0
      %151 = vmatpush2.msra.mxu0 0.0
      %152 = vmatprep.subr.mxu0 0.0
      %153 = vmatpush2.msra.mxu0 0.0
      %154 = vmatprep.subr.mxu0 0.0
      %155 = vmatpush2.msra.mxu0 0.0
      %156 = vmatprep.subr.mxu0 0.0
      %157 = vmatpush2.msra.mxu0 0.0
      %158 = vmatprep.subr.mxu0 0.0
      %159 = vmatpush2.msra.mxu0 0.0
      %160 = vmatprep.subr.mxu0 0.0
      %161 = vmatpush2.msra.mxu0 0.0
      %162 = vmatprep.subr.mxu0 0.0
      %163 = vmatpush2.msra.mxu0 0.0
      %164 = vmatprep.subr.mxu0 0.0
      %165 = vmatpush2.msra.mxu0 0.0
      %166 = vmatprep.subr.mxu0 0.0
      %167 = vmatpush2.msra.mxu0 0.0
      %168 = vmatprep.subr.mxu0 0.0
      %169 = vmatpush2.msra.mxu0 0.0
      %170 = vmatprep.subr.mxu0 0.0
      %171 = vmatpush2.msra.mxu0 0.0
      %172 = vmatprep.mubr.f32.mxu0 0.0
      %173 = vmatmul.mubr.f32.gmra.mxu0 %v106
      %v174 = vpop.f32.mrf.mxu0
      %v175 = vadd.f32 0.0, %v174
      %v176 = vpop.f32.mrf.mxu0
      %177 = vdwg.mxu0
      %v179 = vsel %vm104, %v98, 0
      %181 = vmatprep.subr.mxu0 0.0
      %182 = vmatpush1.msra.mxu0 0.0
      %183 = vmatprep.subr.mxu0 0.0
      %184 = vmatpush1.msra.mxu0 0.0
      %185 = vmatprep.subr.mxu0 0.0
      %186 = vmatpush1.msra.mxu0 0.0
      %187 = vmatprep.subr.mxu0 0.0
      %188 = vmatpush1.msra.mxu0 0.0
      %189 = vmatprep.subr.mxu0 0.0
      %190 = vmatpush1.msra.mxu0 0.0
      %191 = vmatprep.subr.mxu0 0.0
      %192 = vmatpush1.msra.mxu0 0.0
      %193 = vmatprep.subr.mxu0 0.0
      %194 = vmatpush1.msra.mxu0 0.0
      %195 = vmatprep.subr.mxu0 0.0
      %196 = vmatpush1.msra.mxu0 0.0
      %197 = vmatprep.subr.mxu0 0.0
      %198 = vmatpush1.msra.mxu0 0.0
      %199 = vmatprep.subr.mxu0 0.0
      %200 = vmatpush1.msra.mxu0 0.0
      %201 = vmatprep.subr.mxu0 0.0
      %202 = vmatpush1.msra.mxu0 0.0
      %203 = vmatprep.subr.mxu0 0.0
      %204 = vmatpush1.msra.mxu0 0.0
      %205 = vmatprep.subr.mxu0 0.0
      %206 = vmatpush1.msra.mxu0 0.0
      %207 = vmatprep.subr.mxu0 0.0
      %208 = vmatpush1.msra.mxu0 0.0
      %209 = vmatprep.subr.mxu0 0.0
      %210 = vmatpush1.msra.mxu0 0.0
      %211 = vmatprep.subr.mxu0 0.0
      %212 = vmatpush1.msra.mxu0 %v101
      %213 = vmatprep.subr.mxu0 0.0
      %214 = vmatpush2.msra.mxu0 0.0
      %215 = vmatprep.subr.mxu0 0.0
      %216 = vmatpush2.msra.mxu0 0.0
      %217 = vmatprep.subr.mxu0 0.0
      %218 = vmatpush2.msra.mxu0 0.0
      %219 = vmatprep.subr.mxu0 0.0
      %220 = vmatpush2.msra.mxu0 0.0
      %221 = vmatprep.subr.mxu0 0.0
      %222 = vmatpush2.msra.mxu0 0.0
      %223 = vmatprep.subr.mxu0 0.0
      %224 = vmatpush2.msra.mxu0 0.0
      %225 = vmatprep.subr.mxu0 0.0
      %226 = vmatpush2.msra.mxu0 0.0
      %227 = vmatprep.subr.mxu0 0.0
      %228 = vmatpush2.msra.mxu0 0.0
      %229 = vmatprep.subr.mxu0 0.0
      %230 = vmatpush2.msra.mxu0 0.0
      %231 = vmatprep.subr.mxu0 0.0
      %232 = vmatpush2.msra.mxu0 0.0
      %233 = vmatprep.subr.mxu0 0.0
      %234 = vmatpush2.msra.mxu0 0.0
      %235 = vmatprep.subr.mxu0 0.0
      %236 = vmatpush2.msra.mxu0 0.0
      %237 = vmatprep.subr.mxu0 0.0
      %238 = vmatpush2.msra.mxu0 0.0
      %239 = vmatprep.subr.mxu0 0.0
      %240 = vmatpush2.msra.mxu0 0.0
      %241 = vmatprep.subr.mxu0 0.0
      %242 = vmatpush2.msra.mxu0 0.0
      %243 = vmatprep.subr.mxu0 0.0
      %244 = vmatpush2.msra.mxu0 0.0
      %245 = vmatprep.mubr.f32.mxu0 0.0
      %246 = vmatmul.mubr.f32.gmra.mxu0 %v179
      %v247 = vpop.f32.mrf.mxu0
      %v248 = vadd.f32 %v175, %v247
      %v249 = vpop.f32.mrf.mxu0
      %250 = vdwg.mxu0
      %v251 = vlaneseq
      %v252 = vshrl.u32 %v251, 7
      %v253 = vsub.s32 0, %v252
      %v254 = vrot.slane %v103, %v253
      %v255 = vadd.f32 %v248, %v254
      %v256 = vmul.f32 %v255, 0.2
      %v257 = vmax.f32 %v255, %v256
      %v258 = vld [vmem:[#allocation6 + $0x18] sm:$0xff]
      %v259 = vld [vmem:[#allocation6 + $0x20] sm:$0xff]
      %v260 = vld [vmem:[#allocation6 + $0x28] sm:$0xff]
      %v261 = vld [vmem:[#allocation6 + $0x30] sm:$0xff]
      %v262 = vld [vmem:[#allocation6 + $0x38] sm:$0x1]
      %v263 = vlaneseq
      %v264 = vshrl.u32 %v263, 7
      %v265 = vsub.s32 0, %v264
      %v266 = vrot.slane %v262, %v265
      %vm267 = vcmask 261120
      %v269 = vsel %vm267, %v257, 0
      %271 = vmatprep.subr.mxu0 0.0
      %272 = vmatpush1.msra.mxu0 0.0
      %273 = vmatprep.subr.mxu0 0.0
      %274 = vmatpush1.msra.mxu0 0.0
      %275 = vmatprep.subr.mxu0 0.0
      %276 = vmatpush1.msra.mxu0 0.0
      %277 = vmatprep.subr.mxu0 0.0
      %278 = vmatpush1.msra.mxu0 0.0
      %279 = vmatprep.subr.mxu0 0.0
      %280 = vmatpush1.msra.mxu0 0.0
      %281 = vmatprep.subr.mxu0 0.0
      %282 = vmatpush1.msra.mxu0 0.0
      %283 = vmatprep.subr.mxu0 0.0
      %284 = vmatpush1.msra.mxu0 0.0
      %285 = vmatprep.subr.mxu0 0.0
      %286 = vmatpush1.msra.mxu0 0.0
      %287 = vmatprep.subr.mxu0 0.0
      %288 = vmatpush1.msra.mxu0 0.0
      %289 = vmatprep.subr.mxu0 0.0
      %290 = vmatpush1.msra.mxu0 0.0
      %291 = vmatprep.subr.mxu0 0.0
      %292 = vmatpush1.msra.mxu0 0.0
      %293 = vmatprep.subr.mxu0 0.0
      %294 = vmatpush1.msra.mxu0 0.0
      %295 = vmatprep.subr.mxu0 0.0
      %296 = vmatpush1.msra.mxu0 %v261
      %297 = vmatprep.subr.mxu0 0.0
      %298 = vmatpush1.msra.mxu0 %v260
      %299 = vmatprep.subr.mxu0 0.0
      %300 = vmatpush1.msra.mxu0 %v259
      %301 = vmatprep.subr.mxu0 0.0
      %302 = vmatpush1.msra.mxu0 %v258
      %303 = vmatprep.subr.mxu0 0.0
      %304 = vmatpush2.msra.mxu0 0.0
      %305 = vmatprep.subr.mxu0 0.0
      %306 = vmatpush2.msra.mxu0 0.0
      %307 = vmatprep.subr.mxu0 0.0
      %308 = vmatpush2.msra.mxu0 0.0
      %309 = vmatprep.subr.mxu0 0.0
      %310 = vmatpush2.msra.mxu0 0.0
      %311 = vmatprep.subr.mxu0 0.0
      %312 = vmatpush2.msra.mxu0 0.0
      %313 = vmatprep.subr.mxu0 0.0
      %314 = vmatpush2.msra.mxu0 0.0
      %315 = vmatprep.subr.mxu0 0.0
      %316 = vmatpush2.msra.mxu0 0.0
      %317 = vmatprep.subr.mxu0 0.0
      %318 = vmatpush2.msra.mxu0 0.0
      %319 = vmatprep.subr.mxu0 0.0
      %320 = vmatpush2.msra.mxu0 0.0
      %321 = vmatprep.subr.mxu0 0.0
      %322 = vmatpush2.msra.mxu0 0.0
      %323 = vmatprep.subr.mxu0 0.0
      %324 = vmatpush2.msra.mxu0 0.0
      %325 = vmatprep.subr.mxu0 0.0
      %326 = vmatpush2.msra.mxu0 0.0
      %327 = vmatprep.subr.mxu0 0.0
      %328 = vmatpush2.msra.mxu0 0.0
      %329 = vmatprep.subr.mxu0 0.0
      %330 = vmatpush2.msra.mxu0 0.0
      %331 = vmatprep.subr.mxu0 0.0
      %332 = vmatpush2.msra.mxu0 0.0
      %333 = vmatprep.subr.mxu0 0.0
      %334 = vmatpush2.msra.mxu0 0.0
      %335 = vmatprep.mubr.f32.mxu0 0.0
      %336 = vmatmul.mubr.f32.gmra.mxu0 %v269
      %v337 = vpop.f32.mrf.mxu0
      %v338 = vadd.f32 %v266, %v337
      %v339 = vpop.f32.mrf.mxu0
      %340 = vdwg.mxu0
      %v341 = vmul.f32 %v338, 0.2
      %v342 = vmax.f32 %v338, %v341
      %v343 = vld [vmem:[#allocation6 + $0x40] sm:$0xff]
      %v344 = vld [vmem:[#allocation6 + $0x48] sm:$0xff]
      %v345 = vld [vmem:[#allocation6 + $0x50] sm:$0x1]
      %v346 = vlaneseq
      %v347 = vshrl.u32 %v346, 7
      %v348 = vsub.s32 0, %v347
      %v349 = vrot.slane %v345, %v348
      %v351 = vsel %vm49, %v342, 0
      %353 = vmatprep.subr.mxu0 0.0
      %354 = vmatpush1.msra.mxu0 0.0
      %355 = vmatprep.subr.mxu0 0.0
      %356 = vmatpush1.msra.mxu0 0.0
      %357 = vmatprep.subr.mxu0 0.0
      %358 = vmatpush1.msra.mxu0 0.0
      %359 = vmatprep.subr.mxu0 0.0
      %360 = vmatpush1.msra.mxu0 0.0
      %361 = vmatprep.subr.mxu0 0.0
      %362 = vmatpush1.msra.mxu0 0.0
      %363 = vmatprep.subr.mxu0 0.0
      %364 = vmatpush1.msra.mxu0 0.0
      %365 = vmatprep.subr.mxu0 0.0
      %366 = vmatpush1.msra.mxu0 0.0
      %367 = vmatprep.subr.mxu0 0.0
      %368 = vmatpush1.msra.mxu0 0.0
      %369 = vmatprep.subr.mxu0 0.0
      %370 = vmatpush1.msra.mxu0 0.0
      %371 = vmatprep.subr.mxu0 0.0
      %372 = vmatpush1.msra.mxu0 0.0
      %373 = vmatprep.subr.mxu0 0.0
      %374 = vmatpush1.msra.mxu0 0.0
      %375 = vmatprep.subr.mxu0 0.0
      %376 = vmatpush1.msra.mxu0 0.0
      %377 = vmatprep.subr.mxu0 0.0
      %378 = vmatpush1.msra.mxu0 0.0
      %379 = vmatprep.subr.mxu0 0.0
      %380 = vmatpush1.msra.mxu0 0.0
      %381 = vmatprep.subr.mxu0 0.0
      %382 = vmatpush1.msra.mxu0 %v344
      %383 = vmatprep.subr.mxu0 0.0
      %384 = vmatpush1.msra.mxu0 %v343
      %385 = vmatprep.subr.mxu0 0.0
      %386 = vmatpush2.msra.mxu0 0.0
      %387 = vmatprep.subr.mxu0 0.0
      %388 = vmatpush2.msra.mxu0 0.0
      %389 = vmatprep.subr.mxu0 0.0
      %390 = vmatpush2.msra.mxu0 0.0
      %391 = vmatprep.subr.mxu0 0.0
      %392 = vmatpush2.msra.mxu0 0.0
      %393 = vmatprep.subr.mxu0 0.0
      %394 = vmatpush2.msra.mxu0 0.0
      %395 = vmatprep.subr.mxu0 0.0
      %396 = vmatpush2.msra.mxu0 0.0
      %397 = vmatprep.subr.mxu0 0.0
      %398 = vmatpush2.msra.mxu0 0.0
      %399 = vmatprep.subr.mxu0 0.0
      %400 = vmatpush2.msra.mxu0 0.0
      %401 = vmatprep.subr.mxu0 0.0
      %402 = vmatpush2.msra.mxu0 0.0
      %403 = vmatprep.subr.mxu0 0.0
      %404 = vmatpush2.msra.mxu0 0.0
      %405 = vmatprep.subr.mxu0 0.0
      %406 = vmatpush2.msra.mxu0 0.0
      %407 = vmatprep.subr.mxu0 0.0
      %408 = vmatpush2.msra.mxu0 0.0
      %409 = vmatprep.subr.mxu0 0.0
      %410 = vmatpush2.msra.mxu0 0.0
      %411 = vmatprep.subr.mxu0 0.0
      %412 = vmatpush2.msra.mxu0 0.0
      %413 = vmatprep.subr.mxu0 0.0
      %414 = vmatpush2.msra.mxu0 0.0
      %415 = vmatprep.subr.mxu0 0.0
      %416 = vmatpush2.msra.mxu0 0.0
      %417 = vmatprep.mubr.f32.mxu0 0.0
      %418 = vmatmul.mubr.f32.gmra.mxu0 %v351
      %v419 = vpop.f32.mrf.mxu0
      %v420 = vadd.f32 %v349, %v419
      %v421 = vpop.f32.mrf.mxu0
      %422 = vdwg.mxu0
      %v423 = vsub.f32 %v420, %v420
      %v424 = vadd.f32 %v423, 1.0
      %vm425 = vcmask 1024
      %426 = vst.msk [vmem:[%s2] sm:$0x3] %vm425, %v424
    $region25: #{tpu_custom_call.1} parent=1 // pred_fallthru
      _
    // Predicated region
    $region26: #{tpu_custom_call.1} parent=1 // pred_check
      _
    $region27: #{tpu_custom_call.1} parent=1 // pred_check_branch
      %428 = sbr.rel (0) target = $region29
    $region28: #{tpu_custom_call.1} parent=1 // pred_region
      _
    $region29: #{tpu_custom_call.1} parent=1 // pred_fallthru
      _
    // Predicated region
    $region30: #{tpu_custom_call.1} parent=1 // pred_check
      _
    $region31: #{tpu_custom_call.1} parent=1 // pred_check_branch
      %430 = sbr.rel (0) target = $region33
    $region32: #{tpu_custom_call.1} parent=1 // pred_region
      _
    $region33: #{tpu_custom_call.1} parent=1 // pred_fallthru
      _
    %431 = vsyncpa [#allocation5], 1
    %432 = vsyncpa [#allocation7], 1

</llo_original>
